<compile_context>
chip_gen: v6e
topology: v6e:2x2x1
jax: 0.10.0
libtpu: 0.0.40
codegen_flags: <defaults>
</compile_context>

<pallas_src>
import jax
import jax.numpy as jnp
from jax.experimental import pallas as pl
from jax.experimental.pallas import tpu as pltpu

DOWNSAMPLE = 8          # self.coarse_ds
TEMPERATURE = 10.0      # nn.Parameter(10.0), temp_type == 'mul' (constant here)
MASK_FILL = -1.0e9
_EPS_NORM = 1e-6
_EPS_SOFTMAX = 1e-30
_EPS_RSQRT = 1e-12      # NaN guard for feature_normalization (PyTorch has no eps)


# ---------------- fused image-proj + point path + coarse matching ------------------

def _fused_match_kernel(patch_ref, imw_ref, imb_ref, ptf_ref, pw_ref, pb_ref,
                        imm_ref, ptm_ref, conf_ref, imn_ref, ptn_ref):
    # ---- image path: folded patch-embed + cfeat_proj (bf16 MXU, f32 accumulation) ----
    imf = jnp.dot(patch_ref[0], imw_ref[...],
                  preferred_element_type=jnp.float32) + imb_ref[...]      # (M, D) f32

    # ---- point path: feature_normalization (pt_feat_norm=True) ----
    ptf = ptf_ref[0]                                                      # (N, PD) f32
    xc = ptf - jnp.mean(ptf, axis=0, keepdims=True)
    sq = jnp.sum(xc * xc, axis=-1, keepdims=True)                         # (N, 1)
    # divide by max ||xc|| == multiply by rsqrt(max ||xc||^2); eps guards all-equal pts
    xc = xc * jax.lax.rsqrt(jnp.max(sq, axis=0, keepdims=True) + _EPS_RSQRT)

    # pt_proj (pt_dim != cfeat_dim).  Tiny contraction (K=48) -> f32 operands.
    ptp = jnp.dot(xc, pw_ref[...], preferred_element_type=jnp.float32) + pb_ref[...]

    # ---- norm_feat: f / (||f|| + 1e-6); exact reciprocal (only M+N rows, negligible) --
    im_inv = pl.reciprocal(
        jnp.sqrt(jnp.sum(imf * imf, axis=-1, keepdims=True)) + _EPS_NORM, approx=False)
    pt_inv = pl.reciprocal(
        jnp.sqrt(jnp.sum(ptp * ptp, axis=-1, keepdims=True)) + _EPS_NORM, approx=False)
    imn = imf * im_inv                                                    # (M, D)
    ptn = ptp * pt_inv                                                    # (N, D)
    imn_ref[0] = imn
    ptn_ref[0] = ptn

    # ---- coarse matching in transposed (N, M) layout: lane axis = M (lane-dense) ----
    sim = jax.lax.dot_general(ptn, imn, (((1,), (1,)), ((), ())),
                              preferred_element_type=jnp.float32)         # (N, M)
    sim = sim * TEMPERATURE

    # masked_fill_: exact compare+select (correct for any mask values, like PyTorch).
    maskf = ptm_ref[0] * imm_ref[0]                                       # (N,1)*(1,M)
    sim = jnp.where(maskf > 0.0, sim, MASK_FILL)

    # dual softmax with a SINGLE exp:
    #   softmax(sim, im_axis) * softmax(sim, pt_axis) = (e/sum_m e) * (e/sum_n e),
    #   e = exp(sim - global_max).  eps keeps fully-masked rows/cols at 0 (not NaN).
    # Safe while |sim| <= TEMPERATURE (features are L2-normalized); revisit if the
    # temperature parameter becomes large.
    gmax = jnp.max(jnp.max(sim, axis=1, keepdims=True), axis=0, keepdims=True)
    e = jnp.exp(sim - gmax)                       # masked entries underflow to 0
    inv_m = pl.reciprocal(jnp.sum(e, axis=1, keepdims=True) + _EPS_SOFTMAX,
                          approx=False)           # (N, 1): softmax over image tokens
    inv_n = pl.reciprocal(jnp.sum(e, axis=0, keepdims=True) + _EPS_SOFTMAX,
                          approx=False)           # (1, M): softmax over points
    conf_ref[0] = (e * inv_m) * (e * inv_n)       # conf^T, shape (N, M)
    # TODO(synk): for very large token/point counts tile the M axis with a grid and a
    #   two-pass column softmax (keeps per-block working set ~1 MiB; matters on v7x's
    #   64 MiB VMEM).  At this config (N=8, M up to a few thousand) everything fits.
    # TODO(synk): on v6e/v7x run the mask/exp/conf elementwise stage in bf16 (bf16 VPU
    #   and EUP); keep f32 on v5e.


def fused_coarse_match(patches_bf16, im_w_bf16, im_b, pt_feat, pt_w, pt_b,
                       im_mask, pt_mask):
    """One pallas_call per batch: image projection + point path + dual-softmax match."""
    b, m, k = patches_bf16.shape
    _, n, pd = pt_feat.shape
    d = im_w_bf16.shape[1]
    imm = im_mask.reshape(b, 1, m).astype(jnp.float32)     # lane axis = M
    ptm = pt_mask.reshape(b, n, 1).astype(jnp.float32)
    out_shape = (jax.ShapeDtypeStruct((b, n, m), jnp.float32),   # conf^T (lane-dense M)
                 jax.ShapeDtypeStruct((b, m, d), jnp.float32),   # normalized im feats
                 jax.ShapeDtypeStruct((b, n, d), jnp.float32))   # normalized pt feats
    conf_t, imn, ptn = pl.pallas_call(
        _fused_match_kernel,
        out_shape=out_shape,
        grid=(b,),
        in_specs=[pl.BlockSpec((1, m, k), lambda i: (i, 0, 0)),
                  pl.BlockSpec((k, d), lambda i: (0, 0)),
                  pl.BlockSpec((1, d), lambda i: (0, 0)),
                  pl.BlockSpec((1, n, pd), lambda i: (i, 0, 0)),
                  pl.BlockSpec((pd, d), lambda i: (0, 0)),
                  pl.BlockSpec((1, d), lambda i: (0, 0)),
                  pl.BlockSpec((1, 1, m), lambda i: (i, 0, 0)),
                  pl.BlockSpec((1, n, 1), lambda i: (i, 0, 0))],
        out_specs=(pl.BlockSpec((1, n, m), lambda i: (i, 0, 0)),
                   pl.BlockSpec((1, m, d), lambda i: (i, 0, 0)),
                   pl.BlockSpec((1, n, d), lambda i: (i, 0, 0))),
        # TODO(synk): on v7x use pltpu.CORE_PARALLEL (or pl.core_map over a tensorcore
        #   mesh) on the batch axis to split batches across the two TensorCores.
        compiler_params=pltpu.CompilerParams(dimension_semantics=("parallel",)),
    )(patches_bf16, im_w_bf16, im_b, pt_feat.astype(jnp.float32), pt_w, pt_b, imm, ptm)
    # Downstream consumers expect (B, M, N); transposing the tiny (B, N, M) conf is
    # negligible next to the lane-dense in-kernel softmax path.
    return jnp.swapaxes(conf_t, 1, 2), imn, ptn


# ----------------------------- glue / module -------------------------------

def patchify(img, ds):
    # NCHW -> (B, h*w, C*ds*ds), row-major over (h, w) to match flatten(-2).
    b, c, h, w = img.shape
    x = img.reshape(b, c, h // ds, ds, w // ds, ds)
    x = x.transpose(0, 2, 4, 1, 3, 5)
    return x.reshape(b, (h // ds) * (w // ds), c * ds * ds)


class NeRFMatcherCoarseJax:
    def __init__(self, in_ch=4, backbone_dim=40, cfeat_dim=32, pt_dim=48, seed=42):
        self.cfeat_dim = cfeat_dim
        k = jax.random.PRNGKey(seed)
        k0, k1, k2, k3, k4, k5 = jax.random.split(k, 6)
        patch_k = in_ch * DOWNSAMPLE * DOWNSAMPLE
        self.params = dict(
            backbone_w=0.02 * jax.random.normal(k0, (patch_k, backbone_dim), jnp.float32),
            backbone_b=0.02 * jax.random.normal(k1, (backbone_dim,), jnp.float32),
            cfeat_proj_w=0.05 * jax.random.normal(k2, (backbone_dim, cfeat_dim), jnp.float32),
            cfeat_proj_b=0.05 * jax.random.normal(k3, (cfeat_dim,), jnp.float32),
            pt_proj_w=0.05 * jax.random.normal(k4, (pt_dim, cfeat_dim), jnp.float32),
            pt_proj_b=0.05 * jax.random.normal(k5, (cfeat_dim,), jnp.float32),
        )
        p = self.params
        # Fold backbone patch-embed and cfeat_proj into one affine map (exact algebra:
        # (x@W1+b1)@W2+b2 == x@(W1@W2) + (b1@W2+b2), no nonlinearity between them).
        # Casts / reshapes hoisted here so the forward path does no parameter converts.
        self.im_w_bf16 = (p['backbone_w'] @ p['cfeat_proj_w']).astype(jnp.bfloat16)
        self.im_b = (p['backbone_b'] @ p['cfeat_proj_w']
                     + p['cfeat_proj_b']).reshape(1, cfeat_dim).astype(jnp.float32)
        self.pt_w = p['pt_proj_w'].astype(jnp.float32)
        self.pt_b = p['pt_proj_b'].reshape(1, cfeat_dim).astype(jnp.float32)

    def forward_match(self, img, pt_feat, pt3d, im_mask, pt_mask):
        del pt3d  # feature_normalization(pt3d) is dead code for pt_ftype='nerf'
        # TODO(synk): init_backbone / PositionEncodingSine / SelfAttentionBlock /
        #   FourierEmbedding / GenericEncoderLayer are not defined in the reference;
        #   backbone is a synthetic 8x8 strided patch embedding, and pt_pe / pt_sa /
        #   im_sa / coarse_former are disabled in this config.
        patches = patchify(img, DOWNSAMPLE).astype(jnp.bfloat16)   # (B, hw, C*64)
        conf, imn, ptn = fused_coarse_match(
            patches, self.im_w_bf16, self.im_b, pt_feat, self.pt_w, self.pt_b,
            im_mask, pt_mask)
        # TODO(synk): extract_mutual_matches is not defined in the reference; return
        #   conf_matrix and the normalized features only.
        return dict(conf_matrix=conf, im_cfeat=imn, pt_cfeat=ptn)

    def forward(self, data):
        return self.forward_match(data['image'], data['pt_feat'], data['pt3d'],
                                  data['im_mask'], data['pt_mask'])


# ----------------------------- reference (pure JAX) ------------------------
# Mirrors the kernel's numerical recipe (folded bf16 weights, single-exp dual softmax
# with exact division); the recipe is algebraically equivalent to the PyTorch module.

def _ref_forward(matcher, img, pt_feat, im_mask, pt_mask):
    patches = patchify(img, DOWNSAMPLE).astype(jnp.bfloat16)
    imf = jnp.einsum('bmk,kd->bmd', patches, matcher.im_w_bf16,
                     preferred_element_type=jnp.float32) + matcher.im_b
    pf = pt_feat - pt_feat.mean(axis=1, keepdims=True)
    sq = jnp.sum(pf * pf, axis=-1, keepdims=True)
    pf = pf * jax.lax.rsqrt(jnp.max(sq, axis=1, keepdims=True) + _EPS_RSQRT)
    ptf = pf @ matcher.pt_w + matcher.pt_b
    imn = imf / (jnp.linalg.norm(imf, axis=-1, keepdims=True) + _EPS_NORM)
    ptn = ptf / (jnp.linalg.norm(ptf, axis=-1, keepdims=True) + _EPS_NORM)
    sim = jnp.einsum('bmd,bnd->bmn', imn, ptn) * TEMPERATURE
    maskf = im_mask[:, :, None] * pt_mask[:, None, :]
    sim = jnp.where(maskf > 0.0, sim, MASK_FILL)
    gmax = jnp.max(sim, axis=(1, 2), keepdims=True)
    e = jnp.exp(sim - gmax)
    conf = (e / (jnp.sum(e, axis=1, keepdims=True) + _EPS_SOFTMAX)) * \
           (e / (jnp.sum(e, axis=2, keepdims=True) + _EPS_SOFTMAX))
    return conf, imn, ptn


# ----------------------------- main -----------------------------------------

if __name__ == "__main__":
    B, C, H, W = 2, 4, 16, 16          # image, NCHW
    N_PTS, PT_DIM = 8, 48
    M = (H // DOWNSAMPLE) * (W // DOWNSAMPLE)   # coarse image tokens

    key = jax.random.PRNGKey(0)
    k_img, k_ptf, k_pt3 = jax.random.split(key, 3)
    img = jax.random.normal(k_img, (B, C, H, W), jnp.float32)
    pt_feat = jax.random.normal(k_ptf, (B, N_PTS, PT_DIM), jnp.float32)
    pt3d = jax.random.normal(k_pt3, (B, N_PTS, 3), jnp.float32)
    im_mask = jnp.ones((B, M), jnp.float32).at[0, -1].set(0.0)
    pt_mask = jnp.ones((B, N_PTS), jnp.float32).at[1, -2:].set(0.0)

    matcher = NeRFMatcherCoarseJax(in_ch=C, backbone_dim=40, cfeat_dim=32,
                                   pt_dim=PT_DIM, seed=42)
    data = dict(image=img, pt_feat=pt_feat, pt3d=pt3d,
                im_mask=im_mask, pt_mask=pt_mask)

    preds = matcher.forward(data)
    conf = jax.block_until_ready(preds['conf_matrix'])
    imn, ptn = preds['im_cfeat'], preds['pt_cfeat']

    ref_conf, ref_imn, ref_ptn = _ref_forward(matcher, img, pt_feat, im_mask, pt_mask)
    assert conf.shape == (B, M, N_PTS)
    assert jnp.allclose(imn, ref_imn, rtol=1e-4, atol=1e-5), "im feature mismatch"
    assert jnp.allclose(ptn, ref_ptn, rtol=1e-4, atol=1e-5), "pt feature mismatch"
    assert jnp.allclose(conf, ref_conf, rtol=1e-3, atol=1e-6), "conf mismatch"
    assert bool(jnp.all(jnp.isfinite(conf))), "non-finite conf"

    print("KERNEL_OK")
</pallas_src>

<mosaic_0001>
module attributes {stable_mosaic.version = 11 : i64} {
  func.func @_fused_match_kernel(%arg0: i32, %arg1: memref<1x4x256xbf16, #tpu.memory_space<vmem>>, %arg2: memref<256x32xbf16, #tpu.memory_space<vmem>>, %arg3: memref<1x32xf32, #tpu.memory_space<vmem>>, %arg4: memref<1x8x48xf32, #tpu.memory_space<vmem>>, %arg5: memref<48x32xf32, #tpu.memory_space<vmem>>, %arg6: memref<1x32xf32, #tpu.memory_space<vmem>>, %arg7: memref<1x1x4xf32, #tpu.memory_space<vmem>>, %arg8: memref<1x8x1xf32, #tpu.memory_space<vmem>>, %arg9: memref<1x8x4xf32, #tpu.memory_space<vmem>>, %arg10: memref<1x4x32xf32, #tpu.memory_space<vmem>>, %arg11: memref<1x8x32xf32, #tpu.memory_space<vmem>>) attributes {dimension_semantics = [#tpu.dimension_semantics<parallel>], iteration_bounds = array<i64: 2>, scalar_prefetch = 0 : i64, scratch_operands = 0 : i64, tpu.core_type = #tpu.core_type<tc>, window_params = [{transform_indices = @transform_0, window_bounds = array<i64: 1, 4, 256>}, {pipeline_mode = #tpu.pipeline_mode<synchronous>, transform_indices = @transform_1, window_bounds = array<i64: 256, 32>}, {pipeline_mode = #tpu.pipeline_mode<synchronous>, transform_indices = @transform_2, window_bounds = array<i64: 1, 32>}, {transform_indices = @transform_3, window_bounds = array<i64: 1, 8, 48>}, {pipeline_mode = #tpu.pipeline_mode<synchronous>, transform_indices = @transform_4, window_bounds = array<i64: 48, 32>}, {pipeline_mode = #tpu.pipeline_mode<synchronous>, transform_indices = @transform_5, window_bounds = array<i64: 1, 32>}, {transform_indices = @transform_6, window_bounds = array<i64: 1, 1, 4>}, {transform_indices = @transform_7, window_bounds = array<i64: 1, 8, 1>}, {transform_indices = @transform_8, window_bounds = array<i64: 1, 8, 4>}, {transform_indices = @transform_9, window_bounds = array<i64: 1, 4, 32>}, {transform_indices = @transform_10, window_bounds = array<i64: 1, 8, 32>}]} {
    %c0 = arith.constant 0 : index
    %c0_0 = arith.constant 0 : index
    %c0_1 = arith.constant 0 : index
    %0 = vector.load %arg1[%c0, %c0_0, %c0_1] : memref<1x4x256xbf16, #tpu.memory_space<vmem>>, vector<1x4x256xbf16>
    %1 = vector.shape_cast %0 : vector<1x4x256xbf16> to vector<4x256xbf16>
    %c0_2 = arith.constant 0 : index
    %c0_3 = arith.constant 0 : index
    %2 = vector.load %arg2[%c0_2, %c0_3] : memref<256x32xbf16, #tpu.memory_space<vmem>>, vector<256x32xbf16>
    %cst = arith.constant dense<0.000000e+00> : vector<4x32xf32>
    %3 = tpu.matmul %1, %2, %cst {dimension_numbers = #tpu.dot_dimension_numbers<[1], [0], [0], [1], [0, 0, 1, 1], [], []>} : vector<4x256xbf16>, vector<256x32xbf16>, vector<4x32xf32> -> vector<4x32xf32>
    %c0_4 = arith.constant 0 : index
    %c0_5 = arith.constant 0 : index
    %4 = vector.load %arg3[%c0_4, %c0_5] : memref<1x32xf32, #tpu.memory_space<vmem>>, vector<1x32xf32>
    %5 = vector.broadcast %4 : vector<1x32xf32> to vector<4x32xf32>
    %6 = arith.addf %3, %5 : vector<4x32xf32>
    %c0_6 = arith.constant 0 : index
    %c0_7 = arith.constant 0 : index
    %c0_8 = arith.constant 0 : index
    %7 = vector.load %arg4[%c0_6, %c0_7, %c0_8] : memref<1x8x48xf32, #tpu.memory_space<vmem>>, vector<1x8x48xf32>
    %8 = vector.shape_cast %7 : vector<1x8x48xf32> to vector<8x48xf32>
    %cst_9 = arith.constant dense<0.000000e+00> : vector<48xf32>
    %9 = vector.multi_reduction <add>, %8, %cst_9 [0] : vector<8x48xf32> to vector<48xf32>
    %10 = vector.shape_cast %9 : vector<48xf32> to vector<1x48xf32>
    %cst_10 = arith.constant 8.000000e+00 : f32
    %11 = vector.broadcast %cst_10 : f32 to vector<1x48xf32>
    %12 = arith.divf %10, %11 : vector<1x48xf32>
    %13 = vector.broadcast %12 : vector<1x48xf32> to vector<8x48xf32>
    %14 = arith.subf %8, %13 : vector<8x48xf32>
    %15 = arith.mulf %14, %14 : vector<8x48xf32>
    %cst_11 = arith.constant dense<0.000000e+00> : vector<8xf32>
    %16 = vector.multi_reduction <add>, %15, %cst_11 [1] : vector<8x48xf32> to vector<8xf32>
    %17 = vector.shape_cast %16 : vector<8xf32> to vector<8x1xf32>
    %cst_12 = arith.constant dense<0xFF800000> : vector<1xf32>
    %18 = vector.multi_reduction <maximumf>, %17, %cst_12 [0] : vector<8x1xf32> to vector<1xf32>
    %19 = vector.shape_cast %18 : vector<1xf32> to vector<1x1xf32>
    %cst_13 = arith.constant 9.99999996E-13 : f32
    %20 = vector.broadcast %cst_13 : f32 to vector<1x1xf32>
    %21 = arith.addf %19, %20 : vector<1x1xf32>
    %22 = math.rsqrt %21 : vector<1x1xf32>
    %23 = vector.broadcast %22 : vector<1x1xf32> to vector<8x48xf32>
    %24 = arith.mulf %14, %23 : vector<8x48xf32>
    %c0_14 = arith.constant 0 : index
    %c0_15 = arith.constant 0 : index
    %25 = vector.load %arg5[%c0_14, %c0_15] : memref<48x32xf32, #tpu.memory_space<vmem>>, vector<48x32xf32>
    %cst_16 = arith.constant dense<0.000000e+00> : vector<8x32xf32>
    %26 = tpu.matmul %24, %25, %cst_16 {dimension_numbers = #tpu.dot_dimension_numbers<[1], [0], [0], [1], [0, 0, 1, 1], [], []>} : vector<8x48xf32>, vector<48x32xf32>, vector<8x32xf32> -> vector<8x32xf32>
    %c0_17 = arith.constant 0 : index
    %c0_18 = arith.constant 0 : index
    %27 = vector.load %arg6[%c0_17, %c0_18] : memref<1x32xf32, #tpu.memory_space<vmem>>, vector<1x32xf32>
    %28 = vector.broadcast %27 : vector<1x32xf32> to vector<8x32xf32>
    %29 = arith.addf %26, %28 : vector<8x32xf32>
    %30 = arith.mulf %6, %6 : vector<4x32xf32>
    %cst_19 = arith.constant dense<0.000000e+00> : vector<4xf32>
    %31 = vector.multi_reduction <add>, %30, %cst_19 [1] : vector<4x32xf32> to vector<4xf32>
    %32 = vector.shape_cast %31 : vector<4xf32> to vector<4x1xf32>
    %33 = math.sqrt %32 : vector<4x1xf32>
    %cst_20 = arith.constant 9.99999997E-7 : f32
    %34 = vector.broadcast %cst_20 : f32 to vector<4x1xf32>
    %35 = arith.addf %33, %34 : vector<4x1xf32>
    %36 = tpu.reciprocal %35 : vector<4x1xf32> -> vector<4x1xf32>
    %37 = arith.mulf %29, %29 : vector<8x32xf32>
    %cst_21 = arith.constant dense<0.000000e+00> : vector<8xf32>
    %38 = vector.multi_reduction <add>, %37, %cst_21 [1] : vector<8x32xf32> to vector<8xf32>
    %39 = vector.shape_cast %38 : vector<8xf32> to vector<8x1xf32>
    %40 = math.sqrt %39 : vector<8x1xf32>
    %cst_22 = arith.constant 9.99999997E-7 : f32
    %41 = vector.broadcast %cst_22 : f32 to vector<8x1xf32>
    %42 = arith.addf %40, %41 : vector<8x1xf32>
    %43 = tpu.reciprocal %42 : vector<8x1xf32> -> vector<8x1xf32>
    %44 = vector.broadcast %36 : vector<4x1xf32> to vector<4x32xf32>
    %45 = arith.mulf %6, %44 : vector<4x32xf32>
    %46 = vector.broadcast %43 : vector<8x1xf32> to vector<8x32xf32>
    %47 = arith.mulf %29, %46 : vector<8x32xf32>
    %c0_23 = arith.constant 0 : index
    %c0_24 = arith.constant 0 : index
    %c0_25 = arith.constant 0 : index
    %48 = vector.load %arg10[%c0_23, %c0_24, %c0_25] : memref<1x4x32xf32, #tpu.memory_space<vmem>>, vector<1x4x32xf32>
    %49 = vector.shape_cast %48 : vector<1x4x32xf32> to vector<4x32xf32>
    %50 = vector.shape_cast %45 : vector<4x32xf32> to vector<1x4x32xf32>
    tpu.vector_store %arg10[%c0_23, %c0_24, %c0_25], %50 {strides = array<i32>} : memref<1x4x32xf32, #tpu.memory_space<vmem>>, vector<1x4x32xf32>,
    %c0_26 = arith.constant 0 : index
    %c0_27 = arith.constant 0 : index
    %c0_28 = arith.constant 0 : index
    %51 = vector.load %arg11[%c0_26, %c0_27, %c0_28] : memref<1x8x32xf32, #tpu.memory_space<vmem>>, vector<1x8x32xf32>
    %52 = vector.shape_cast %51 : vector<1x8x32xf32> to vector<8x32xf32>
    %53 = vector.shape_cast %47 : vector<8x32xf32> to vector<1x8x32xf32>
    tpu.vector_store %arg11[%c0_26, %c0_27, %c0_28], %53 {strides = array<i32>} : memref<1x8x32xf32, #tpu.memory_space<vmem>>, vector<1x8x32xf32>,
    %cst_29 = arith.constant dense<0.000000e+00> : vector<8x4xf32>
    %54 = tpu.matmul %47, %45, %cst_29 {dimension_numbers = #tpu.dot_dimension_numbers<[1], [1], [0], [0], [0, 0, 1, 0], [], []>} : vector<8x32xf32>, vector<4x32xf32>, vector<8x4xf32> -> vector<8x4xf32>
    %cst_30 = arith.constant 1.000000e+01 : f32
    %55 = vector.broadcast %cst_30 : f32 to vector<8x4xf32>
    %56 = arith.mulf %54, %55 : vector<8x4xf32>
    %c0_31 = arith.constant 0 : index
    %c0_32 = arith.constant 0 : index
    %c0_33 = arith.constant 0 : index
    %57 = vector.load %arg8[%c0_31, %c0_32, %c0_33] : memref<1x8x1xf32, #tpu.memory_space<vmem>>, vector<1x8x1xf32>
    %58 = vector.shape_cast %57 : vector<1x8x1xf32> to vector<8x1xf32>
    %c0_34 = arith.constant 0 : index
    %c0_35 = arith.constant 0 : index
    %c0_36 = arith.constant 0 : index
    %59 = vector.load %arg7[%c0_34, %c0_35, %c0_36] : memref<1x1x4xf32, #tpu.memory_space<vmem>>, vector<1x1x4xf32>
    %60 = vector.shape_cast %59 : vector<1x1x4xf32> to vector<1x4xf32>
    %61 = vector.broadcast %58 : vector<8x1xf32> to vector<8x4xf32>
    %62 = vector.broadcast %60 : vector<1x4xf32> to vector<8x4xf32>
    %63 = arith.mulf %61, %62 : vector<8x4xf32>
    %cst_37 = arith.constant 0.000000e+00 : f32
    %64 = vector.broadcast %cst_37 : f32 to vector<8x4xf32>
    %65 = arith.cmpf ogt, %63, %64 : vector<8x4xf32>
    %cst_38 = arith.constant -1.000000e+09 : f32
    %66 = vector.broadcast %cst_38 : f32 to vector<8x4xf32>
    %67 = arith.select %65, %56, %66 : vector<8x4xi1>, vector<8x4xf32>
    %cst_39 = arith.constant dense<0xFF800000> : vector<8xf32>
    %68 = vector.multi_reduction <maximumf>, %67, %cst_39 [1] : vector<8x4xf32> to vector<8xf32>
    %69 = vector.shape_cast %68 : vector<8xf32> to vector<8x1xf32>
    %cst_40 = arith.constant dense<0xFF800000> : vector<1xf32>
    %70 = vector.multi_reduction <maximumf>, %69, %cst_40 [0] : vector<8x1xf32> to vector<1xf32>
    %71 = vector.shape_cast %70 : vector<1xf32> to vector<1x1xf32>
    %72 = vector.broadcast %71 : vector<1x1xf32> to vector<8x4xf32>
    %73 = arith.subf %67, %72 : vector<8x4xf32>
    %74 = math.exp %73 : vector<8x4xf32>
    %cst_41 = arith.constant dense<0.000000e+00> : vector<8xf32>
    %75 = vector.multi_reduction <add>, %74, %cst_41 [1] : vector<8x4xf32> to vector<8xf32>
    %76 = vector.shape_cast %75 : vector<8xf32> to vector<8x1xf32>
    %cst_42 = arith.constant 1.000000e-30 : f32
    %77 = vector.broadcast %cst_42 : f32 to vector<8x1xf32>
    %78 = arith.addf %76, %77 : vector<8x1xf32>
    %79 = tpu.reciprocal %78 : vector<8x1xf32> -> vector<8x1xf32>
    %cst_43 = arith.constant dense<0.000000e+00> : vector<4xf32>
    %80 = vector.multi_reduction <add>, %74, %cst_43 [0] : vector<8x4xf32> to vector<4xf32>
    %81 = vector.shape_cast %80 : vector<4xf32> to vector<1x4xf32>
    %cst_44 = arith.constant 1.000000e-30 : f32
    %82 = vector.broadcast %cst_44 : f32 to vector<1x4xf32>
    %83 = arith.addf %81, %82 : vector<1x4xf32>
    %84 = tpu.reciprocal %83 : vector<1x4xf32> -> vector<1x4xf32>
    %85 = vector.broadcast %79 : vector<8x1xf32> to vector<8x4xf32>
    %86 = arith.mulf %74, %85 : vector<8x4xf32>
    %87 = vector.broadcast %84 : vector<1x4xf32> to vector<8x4xf32>
    %88 = arith.mulf %74, %87 : vector<8x4xf32>
    %89 = arith.mulf %86, %88 : vector<8x4xf32>
    %c0_45 = arith.constant 0 : index
    %c0_46 = arith.constant 0 : index
    %c0_47 = arith.constant 0 : index
    %90 = vector.load %arg9[%c0_45, %c0_46, %c0_47] : memref<1x8x4xf32, #tpu.memory_space<vmem>>, vector<1x8x4xf32>
    %91 = vector.shape_cast %90 : vector<1x8x4xf32> to vector<8x4xf32>
    %92 = vector.shape_cast %89 : vector<8x4xf32> to vector<1x8x4xf32>
    tpu.vector_store %arg9[%c0_45, %c0_46, %c0_47], %92 {strides = array<i32>} : memref<1x8x4xf32, #tpu.memory_space<vmem>>, vector<1x8x4xf32>,
    return
  }
  func.func @transform_0(%arg0: i32) -> (i32, i32, i32) {
    %c0_i32 = arith.constant 0 : i32
    %c0_i32_0 = arith.constant 0 : i32
    %c0_i32_1 = arith.constant 0 : i32
    return %arg0, %c0_i32, %c0_i32_0 : i32, i32, i32
  }
  func.func @transform_1(%arg0: i32) -> (i32, i32) {
    %c0_i32 = arith.constant 0 : i32
    %c0_i32_0 = arith.constant 0 : i32
    %c0_i32_1 = arith.constant 0 : i32
    return %c0_i32, %c0_i32_0 : i32, i32
  }
  func.func @transform_2(%arg0: i32) -> (i32, i32) {
    %c0_i32 = arith.constant 0 : i32
    %c0_i32_0 = arith.constant 0 : i32
    %c0_i32_1 = arith.constant 0 : i32
    return %c0_i32, %c0_i32_0 : i32, i32
  }
  func.func @transform_3(%arg0: i32) -> (i32, i32, i32) {
    %c0_i32 = arith.constant 0 : i32
    %c0_i32_0 = arith.constant 0 : i32
    %c0_i32_1 = arith.constant 0 : i32
    return %arg0, %c0_i32, %c0_i32_0 : i32, i32, i32
  }
  func.func @transform_4(%arg0: i32) -> (i32, i32) {
    %c0_i32 = arith.constant 0 : i32
    %c0_i32_0 = arith.constant 0 : i32
    %c0_i32_1 = arith.constant 0 : i32
    return %c0_i32, %c0_i32_0 : i32, i32
  }
  func.func @transform_5(%arg0: i32) -> (i32, i32) {
    %c0_i32 = arith.constant 0 : i32
    %c0_i32_0 = arith.constant 0 : i32
    %c0_i32_1 = arith.constant 0 : i32
    return %c0_i32, %c0_i32_0 : i32, i32
  }
  func.func @transform_6(%arg0: i32) -> (i32, i32, i32) {
    %c0_i32 = arith.constant 0 : i32
    %c0_i32_0 = arith.constant 0 : i32
    %c0_i32_1 = arith.constant 0 : i32
    return %arg0, %c0_i32, %c0_i32_0 : i32, i32, i32
  }
  func.func @transform_7(%arg0: i32) -> (i32, i32, i32) {
    %c0_i32 = arith.constant 0 : i32
    %c0_i32_0 = arith.constant 0 : i32
    %c0_i32_1 = arith.constant 0 : i32
    return %arg0, %c0_i32, %c0_i32_0 : i32, i32, i32
  }
  func.func @transform_8(%arg0: i32) -> (i32, i32, i32) {
    %c0_i32 = arith.constant 0 : i32
    %c0_i32_0 = arith.constant 0 : i32
    %c0_i32_1 = arith.constant 0 : i32
    return %arg0, %c0_i32, %c0_i32_0 : i32, i32, i32
  }
  func.func @transform_9(%arg0: i32) -> (i32, i32, i32) {
    %c0_i32 = arith.constant 0 : i32
    %c0_i32_0 = arith.constant 0 : i32
    %c0_i32_1 = arith.constant 0 : i32
    return %arg0, %c0_i32, %c0_i32_0 : i32, i32, i32
  }
  func.func @transform_10(%arg0: i32) -> (i32, i32, i32) {
    %c0_i32 = arith.constant 0 : i32
    %c0_i32_0 = arith.constant 0 : i32
    %c0_i32_1 = arith.constant 0 : i32
    return %arg0, %c0_i32, %c0_i32_0 : i32, i32, i32
  }
}

</mosaic_0001>

<llo_original>
// kernel: tpu_custom_call.1
$region0: #{tpu_custom_call.1}
  #allocation0 [shape = 'u32[]', space=smem, size = 0x4, offset = 0x4, fixed_abs, tag = 'smem constant byte address 0x4 - core index']
  #allocation1 [shape = 'u32[144,128]{1,0:T(1,128)}', space=vmem, size = 0x12000, scoped, tag = 'internal scratch']
  %s0 = inlined_call_operand.vmem [shape: bf16[2,4,256], index: 0, kind: input, shape index: {}]
  %s1 = inlined_call_operand.vmem [shape: bf16[256,32], index: 1, kind: input, shape index: {}]
  %s2 = inlined_call_operand.vmem [shape: f32[1,32], index: 2, kind: input, shape index: {}]
  %s3 = inlined_call_operand.vmem [shape: f32[2,8,48], index: 3, kind: input, shape index: {}]
  %s4 = inlined_call_operand.vmem [shape: f32[48,32], index: 4, kind: input, shape index: {}]
  %s5 = inlined_call_operand.vmem [shape: f32[1,32], index: 5, kind: input, shape index: {}]
  %s6 = inlined_call_operand.vmem [shape: f32[2,1,4], index: 6, kind: input, shape index: {}]
  %s7 = inlined_call_operand.vmem [shape: f32[2,8,1], index: 7, kind: input, shape index: {}]
  %s8 = inlined_call_operand.vmem [shape: f32[2,8,4], index: 8, kind: output, shape index: {0}]
  %s9 = inlined_call_operand.hbm [shape: f32[2,4,32], index: 9, kind: output, shape index: {1}]
  %s10 = inlined_call_operand.hbm [shape: f32[2,8,32], index: 10, kind: output, shape index: {2}]
  %11 = xla_tuple %s8, %s9, %s10
  %s12 = sld [smem:[#allocation0]]
  $region81: #{tpu_custom_call.1} parent=0
    _
  %s14 = ssub.s32 1, %s12
  %s15 = scalar_select 0, %s14, %s12
  $region1: #{tpu_custom_call.1} parent=0
    #allocation2 [shape = 'u8[4096]{0}', space=vmem, size = 0x1000, scoped, tag = 'output window, operand 1']
    #allocation3 [shape = 's32[2]{0}', space=sflag, size = 0x8, scoped, tag = 'scoped memory for tpu_custom_call.1']
    #allocation4 [shape = 'u8[8192]{0}', space=vmem, size = 0x2000, scoped, tag = 'output window, operand 2']
    #allocation5 [shape = 's32[2]{0}', space=sflag, size = 0x8, scoped, tag = 'scoped memory for tpu_custom_call.1']
    %16 = vsyncpa [#allocation3], 0
    %s17 = scalar_lea.sflag [#allocation3], 1
    %18 = vsyncpa %s17, 0
    %19 = vsyncpa [#allocation5], 0
    %s20 = scalar_lea.sflag [#allocation5], 1
    %21 = vsyncpa %s20, 0
    loop: start=0, step=1, limit=4
    $region2: #{tpu_custom_call.1} parent=1 // loop_pre_header
      _
    $region3: #{tpu_custom_call.1} parent=1 // loop_header
      %s23 = sphi 0, %s27
      %p24 = scmp.ge.s32.totalorder %s23, 4
      %s33 = sphi 0, %s35
      %s36 = sphi 0, %s33
      %s37 = sphi 0, %s36
      %s53 = sphi 0, %s37
      %s57 = sphi 0, %s57
      %s59 = sphi 0, %s57
      %s60 = sphi 0, %s59
      %s74 = sphi 0, %s60
      %s78 = sphi 0, %s78
      %s80 = sphi 0, %s78
      %s81 = sphi 0, %s80
      %s95 = sphi 0, %s81
      %s101 = sphi 0, %s103
      %s104 = sphi 0, %s101
      %s105 = sphi 0, %s104
      %s121 = sphi 0, %s105
      %s125 = sphi 0, %s125
      %s127 = sphi 0, %s125
      %s128 = sphi 0, %s127
      %s142 = sphi 0, %s128
      %s146 = sphi 0, %s146
      %s148 = sphi 0, %s146
      %s149 = sphi 0, %s148
      %s163 = sphi 0, %s149
      %s169 = sphi 0, %s171
      %s172 = sphi 0, %s169
      %s173 = sphi 0, %s172
      %s189 = sphi 0, %s173
      %s195 = sphi 0, %s197
      %s198 = sphi 0, %s195
      %s199 = sphi 0, %s198
      %s215 = sphi 0, %s199
      %s221 = sphi 0, %s223
      %s224 = sphi 0, %s221
      %s225 = sphi 0, %s224
      %s241 = sphi 0, %s225
      %s247 = sphi 0, %s249
      %s250 = sphi 0, %s247
      %s251 = sphi 0, %s250
      %s267 = sphi 0, %s251
      %s273 = sphi 0, %s275
      %s276 = sphi 0, %s273
      %s277 = sphi 0, %s276
      %s293 = sphi 0, %s277
    $region4: #{tpu_custom_call.1} parent=1 // loop_header_branch
      %26 = sbr.rel (%p24) target = $region8
    $region5: #{tpu_custom_call.1} parent=1 // loop_body
      %s28 = ssub.s32 %s23, 1
      %s29 = ssub.s32 %s23, 2
      %s30 = sadd.s32 %s23, 1
      %s31 = ssub.s32 %s23, %s30
      %p32 = scmp.eq.s32.totalorder %s31, 0
      %s34 = sadd.s32 %s33, 1
      %s35 = scalar_select %p32, %s33, %s34
      %p38 = pneg %p32
      %p39 = scmp.eq.s32.totalorder %s23, 1
      %p40 = por %p38, %p39
      %p41 = scmp.ne.s32.totalorder %s33, %s36
      %p42 = scmp.eq.s32.totalorder %s23, 0
      %p43 = por %p41, %p42
      %p44 = scmp.ne.s32.totalorder %s33, %s36
      %p45 = scmp.eq.s32.totalorder %s28, 1
      %p46 = por %p44, %p45
      %p47 = scmp.ne.s32.totalorder %s36, %s37
      %p48 = scmp.eq.s32.totalorder %s28, 0
      %p49 = por %p47, %p48
      %p50 = scmp.ne.s32.totalorder %s36, %s37
      %p51 = scmp.eq.s32.totalorder %s29, 1
      %p52 = por %p50, %p51
      %p54 = scmp.ne.s32.totalorder %s37, %s53
      %p55 = scmp.eq.s32.totalorder %s29, 0
      %p56 = por %p54, %p55
      %s58 = sadd.s32 %s57, 1
      %p61 = scmp.eq.s32.totalorder %s23, 1
      %p62 = scmp.ne.s32.totalorder %s57, %s59
      %p63 = scmp.eq.s32.totalorder %s23, 0
      %p64 = por %p62, %p63
      %p65 = scmp.ne.s32.totalorder %s57, %s59
      %p66 = scmp.eq.s32.totalorder %s28, 1
      %p67 = por %p65, %p66
      %p68 = scmp.ne.s32.totalorder %s59, %s60
      %p69 = scmp.eq.s32.totalorder %s28, 0
      %p70 = por %p68, %p69
      %p71 = scmp.ne.s32.totalorder %s59, %s60
      %p72 = scmp.eq.s32.totalorder %s29, 1
      %p73 = por %p71, %p72
      %p75 = scmp.ne.s32.totalorder %s60, %s74
      %p76 = scmp.eq.s32.totalorder %s29, 0
      %p77 = por %p75, %p76
      %s79 = sadd.s32 %s78, 1
      %p82 = scmp.eq.s32.totalorder %s23, 1
      %p83 = scmp.ne.s32.totalorder %s78, %s80
      %p84 = scmp.eq.s32.totalorder %s23, 0
      %p85 = por %p83, %p84
      %p86 = scmp.ne.s32.totalorder %s78, %s80
      %p87 = scmp.eq.s32.totalorder %s28, 1
      %p88 = por %p86, %p87
      %p89 = scmp.ne.s32.totalorder %s80, %s81
      %p90 = scmp.eq.s32.totalorder %s28, 0
      %p91 = por %p89, %p90
      %p92 = scmp.ne.s32.totalorder %s80, %s81
      %p93 = scmp.eq.s32.totalorder %s29, 1
      %p94 = por %p92, %p93
      %p96 = scmp.ne.s32.totalorder %s81, %s95
      %p97 = scmp.eq.s32.totalorder %s29, 0
      %p98 = por %p96, %p97
      %s99 = ssub.s32 %s23, %s30
      %p100 = scmp.eq.s32.totalorder %s99, 0
      %s102 = sadd.s32 %s101, 1
      %s103 = scalar_select %p100, %s101, %s102
      %p106 = pneg %p100
      %p107 = scmp.eq.s32.totalorder %s23, 1
      %p108 = por %p106, %p107
      %p109 = scmp.ne.s32.totalorder %s101, %s104
      %p110 = scmp.eq.s32.totalorder %s23, 0
      %p111 = por %p109, %p110
      %p112 = scmp.ne.s32.totalorder %s101, %s104
      %p113 = scmp.eq.s32.totalorder %s28, 1
      %p114 = por %p112, %p113
      %p115 = scmp.ne.s32.totalorder %s104, %s105
      %p116 = scmp.eq.s32.totalorder %s28, 0
      %p117 = por %p115, %p116
      %p118 = scmp.ne.s32.totalorder %s104, %s105
      %p119 = scmp.eq.s32.totalorder %s29, 1
      %p120 = por %p118, %p119
      %p122 = scmp.ne.s32.totalorder %s105, %s121
      %p123 = scmp.eq.s32.totalorder %s29, 0
      %p124 = por %p122, %p123
      %s126 = sadd.s32 %s125, 1
      %p129 = scmp.eq.s32.totalorder %s23, 1
      %p130 = scmp.ne.s32.totalorder %s125, %s127
      %p131 = scmp.eq.s32.totalorder %s23, 0
      %p132 = por %p130, %p131
      %p133 = scmp.ne.s32.totalorder %s125, %s127
      %p134 = scmp.eq.s32.totalorder %s28, 1
      %p135 = por %p133, %p134
      %p136 = scmp.ne.s32.totalorder %s127, %s128
      %p137 = scmp.eq.s32.totalorder %s28, 0
      %p138 = por %p136, %p137
      %p139 = scmp.ne.s32.totalorder %s127, %s128
      %p140 = scmp.eq.s32.totalorder %s29, 1
      %p141 = por %p139, %p140
      %p143 = scmp.ne.s32.totalorder %s128, %s142
      %p144 = scmp.eq.s32.totalorder %s29, 0
      %p145 = por %p143, %p144
      %s147 = sadd.s32 %s146, 1
      %p150 = scmp.eq.s32.totalorder %s23, 1
      %p151 = scmp.ne.s32.totalorder %s146, %s148
      %p152 = scmp.eq.s32.totalorder %s23, 0
      %p153 = por %p151, %p152
      %p154 = scmp.ne.s32.totalorder %s146, %s148
      %p155 = scmp.eq.s32.totalorder %s28, 1
      %p156 = por %p154, %p155
      %p157 = scmp.ne.s32.totalorder %s148, %s149
      %p158 = scmp.eq.s32.totalorder %s28, 0
      %p159 = por %p157, %p158
      %p160 = scmp.ne.s32.totalorder %s148, %s149
      %p161 = scmp.eq.s32.totalorder %s29, 1
      %p162 = por %p160, %p161
      %p164 = scmp.ne.s32.totalorder %s149, %s163
      %p165 = scmp.eq.s32.totalorder %s29, 0
      %p166 = por %p164, %p165
      %s167 = ssub.s32 %s23, %s30
      %p168 = scmp.eq.s32.totalorder %s167, 0
      %s170 = sadd.s32 %s169, 1
      %s171 = scalar_select %p168, %s169, %s170
      %p174 = pneg %p168
      %p175 = scmp.eq.s32.totalorder %s23, 1
      %p176 = por %p174, %p175
      %p177 = scmp.ne.s32.totalorder %s169, %s172
      %p178 = scmp.eq.s32.totalorder %s23, 0
      %p179 = por %p177, %p178
      %p180 = scmp.ne.s32.totalorder %s169, %s172
      %p181 = scmp.eq.s32.totalorder %s28, 1
      %p182 = por %p180, %p181
      %p183 = scmp.ne.s32.totalorder %s172, %s173
      %p184 = scmp.eq.s32.totalorder %s28, 0
      %p185 = por %p183, %p184
      %p186 = scmp.ne.s32.totalorder %s172, %s173
      %p187 = scmp.eq.s32.totalorder %s29, 1
      %p188 = por %p186, %p187
      %p190 = scmp.ne.s32.totalorder %s173, %s189
      %p191 = scmp.eq.s32.totalorder %s29, 0
      %p192 = por %p190, %p191
      %s193 = ssub.s32 %s23, %s30
      %p194 = scmp.eq.s32.totalorder %s193, 0
      %s196 = sadd.s32 %s195, 1
      %s197 = scalar_select %p194, %s195, %s196
      %p200 = pneg %p194
      %p201 = scmp.eq.s32.totalorder %s23, 1
      %p202 = por %p200, %p201
      %p203 = scmp.ne.s32.totalorder %s195, %s198
      %p204 = scmp.eq.s32.totalorder %s23, 0
      %p205 = por %p203, %p204
      %p206 = scmp.ne.s32.totalorder %s195, %s198
      %p207 = scmp.eq.s32.totalorder %s28, 1
      %p208 = por %p206, %p207
      %p209 = scmp.ne.s32.totalorder %s198, %s199
      %p210 = scmp.eq.s32.totalorder %s28, 0
      %p211 = por %p209, %p210
      %p212 = scmp.ne.s32.totalorder %s198, %s199
      %p213 = scmp.eq.s32.totalorder %s29, 1
      %p214 = por %p212, %p213
      %p216 = scmp.ne.s32.totalorder %s199, %s215
      %p217 = scmp.eq.s32.totalorder %s29, 0
      %p218 = por %p216, %p217
      %s219 = ssub.s32 %s23, %s30
      %p220 = scmp.eq.s32.totalorder %s219, 0
      %s222 = sadd.s32 %s221, 1
      %s223 = scalar_select %p220, %s221, %s222
      %p226 = pneg %p220
      %p227 = scmp.eq.s32.totalorder %s23, 1
      %p228 = por %p226, %p227
      %p229 = scmp.ne.s32.totalorder %s221, %s224
      %p230 = scmp.eq.s32.totalorder %s23, 0
      %p231 = por %p229, %p230
      %p232 = scmp.ne.s32.totalorder %s221, %s224
      %p233 = scmp.eq.s32.totalorder %s28, 1
      %p234 = por %p232, %p233
      %p235 = scmp.ne.s32.totalorder %s224, %s225
      %p236 = scmp.eq.s32.totalorder %s28, 0
      %p237 = por %p235, %p236
      %p238 = scmp.ne.s32.totalorder %s224, %s225
      %p239 = scmp.eq.s32.totalorder %s29, 1
      %p240 = por %p238, %p239
      %p242 = scmp.ne.s32.totalorder %s225, %s241
      %p243 = scmp.eq.s32.totalorder %s29, 0
      %p244 = por %p242, %p243
      %s245 = ssub.s32 %s23, %s30
      %p246 = scmp.eq.s32.totalorder %s245, 0
      %s248 = sadd.s32 %s247, 1
      %s249 = scalar_select %p246, %s247, %s248
      %p252 = pneg %p246
      %p253 = scmp.eq.s32.totalorder %s23, 1
      %p254 = por %p252, %p253
      %p255 = scmp.ne.s32.totalorder %s247, %s250
      %p256 = scmp.eq.s32.totalorder %s23, 0
      %p257 = por %p255, %p256
      %p258 = scmp.ne.s32.totalorder %s247, %s250
      %p259 = scmp.eq.s32.totalorder %s28, 1
      %p260 = por %p258, %p259
      %p261 = scmp.ne.s32.totalorder %s250, %s251
      %p262 = scmp.eq.s32.totalorder %s28, 0
      %p263 = por %p261, %p262
      %p264 = scmp.ne.s32.totalorder %s250, %s251
      %p265 = scmp.eq.s32.totalorder %s29, 1
      %p266 = por %p264, %p265
      %p268 = scmp.ne.s32.totalorder %s251, %s267
      %p269 = scmp.eq.s32.totalorder %s29, 0
      %p270 = por %p268, %p269
      %s271 = ssub.s32 %s23, %s30
      %p272 = scmp.eq.s32.totalorder %s271, 0
      %s274 = sadd.s32 %s273, 1
      %s275 = scalar_select %p272, %s273, %s274
      %p278 = pneg %p272
      %p279 = scmp.eq.s32.totalorder %s23, 1
      %p280 = por %p278, %p279
      %p281 = scmp.ne.s32.totalorder %s273, %s276
      %p282 = scmp.eq.s32.totalorder %s23, 0
      %p283 = por %p281, %p282
      %p284 = scmp.ne.s32.totalorder %s273, %s276
      %p285 = scmp.eq.s32.totalorder %s28, 1
      %p286 = por %p284, %p285
      %p287 = scmp.ne.s32.totalorder %s276, %s277
      %p288 = scmp.eq.s32.totalorder %s28, 0
      %p289 = por %p287, %p288
      %p290 = scmp.ne.s32.totalorder %s276, %s277
      %p291 = scmp.eq.s32.totalorder %s29, 1
      %p292 = por %p290, %p291
      %p294 = scmp.ne.s32.totalorder %s277, %s293
      %p295 = scmp.eq.s32.totalorder %s29, 0
      %p296 = por %p294, %p295
      %p297 = scmp.le.s32.totalorder 1, %s23
      %p298 = scmp.lt.s32.totalorder %s23, 3
      %p299 = pnand %p297, %p298
      %p300 = pneg %p299
      // Predicated region
      $region9: #{tpu_custom_call.1} parent=5 // pred_check
        _
      $region10: #{tpu_custom_call.1} parent=5 // pred_check_branch
        %302 = sbr.rel (%p299) target = $region12
      $region11: #{tpu_custom_call.1} parent=5 // pred_region
        %s303 = ssub.s32 %s23, 1
        // Predicated region
        $region13: #{tpu_custom_call.1} parent=11 // pred_check
          %p304 = pneg %p70
        $region14: #{tpu_custom_call.1} parent=11 // pred_check_branch
          %306 = sbr.rel (%p304) target = $region16
        $region15: #{tpu_custom_call.1} parent=11 // pred_region
          _
        $region16: #{tpu_custom_call.1} parent=11 // pred_fallthru
          _
        // Predicated region
        $region17: #{tpu_custom_call.1} parent=11 // pred_check
          %p307 = pneg %p91
        $region18: #{tpu_custom_call.1} parent=11 // pred_check_branch
          %309 = sbr.rel (%p307) target = $region20
        $region19: #{tpu_custom_call.1} parent=11 // pred_region
          _
        $region20: #{tpu_custom_call.1} parent=11 // pred_fallthru
          _
        // Predicated region
        $region21: #{tpu_custom_call.1} parent=11 // pred_check
          %p310 = pneg %p138
        $region22: #{tpu_custom_call.1} parent=11 // pred_check_branch
          %312 = sbr.rel (%p310) target = $region24
        $region23: #{tpu_custom_call.1} parent=11 // pred_region
          _
        $region24: #{tpu_custom_call.1} parent=11 // pred_fallthru
          _
        // Predicated region
        $region25: #{tpu_custom_call.1} parent=11 // pred_check
          %p313 = pneg %p159
        $region26: #{tpu_custom_call.1} parent=11 // pred_check_branch
          %315 = sbr.rel (%p313) target = $region28
        $region27: #{tpu_custom_call.1} parent=11 // pred_region
          _
        $region28: #{tpu_custom_call.1} parent=11 // pred_fallthru
          _
      $region12: #{tpu_custom_call.1} parent=5 // pred_fallthru
        _
      %p316 = scmp.lt.s32.totalorder %s23, 2
      // Predicated region
      $region29: #{tpu_custom_call.1} parent=5 // pred_check
        %p317 = pneg %p316
      $region30: #{tpu_custom_call.1} parent=5 // pred_check_branch
        %319 = sbr.rel (%p317) target = $region32
      $region31: #{tpu_custom_call.1} parent=5 // pred_region
        // Predicated region
        $region33: #{tpu_custom_call.1} parent=31 // pred_check
          %p320 = pneg %p43
        $region34: #{tpu_custom_call.1} parent=31 // pred_check_branch
          %322 = sbr.rel (%p320) target = $region36
        $region35: #{tpu_custom_call.1} parent=31 // pred_region
          %p323 = scmp.lt.s32.totalorder %s23, 1
          %s324 = scalar_select %p323, %s23, 1
          %s325 = smul.addr %s324, 2
          %s326 = smul.addr %s325, 2
          %s327 = scalar_lea.vmem %s0, %s326
        $region36: #{tpu_custom_call.1} parent=31 // pred_fallthru
          _
        // Predicated region
        $region37: #{tpu_custom_call.1} parent=31 // pred_check
          %p328 = pneg %p111
        $region38: #{tpu_custom_call.1} parent=31 // pred_check_branch
          %330 = sbr.rel (%p328) target = $region40
        $region39: #{tpu_custom_call.1} parent=31 // pred_region
          %p331 = scmp.lt.s32.totalorder %s23, 1
          %s332 = scalar_select %p331, %s23, 1
          %s333 = smul.addr %s332, 8
          %s334 = scalar_lea.vmem %s3, %s333
        $region40: #{tpu_custom_call.1} parent=31 // pred_fallthru
          _
        // Predicated region
        $region41: #{tpu_custom_call.1} parent=31 // pred_check
          %p335 = pneg %p179
        $region42: #{tpu_custom_call.1} parent=31 // pred_check_branch
          %337 = sbr.rel (%p335) target = $region44
        $region43: #{tpu_custom_call.1} parent=31 // pred_region
          %p338 = scmp.lt.s32.totalorder %s23, 1
          %s339 = scalar_select %p338, %s23, 1
          %s340 = scalar_lea.vmem %s6, %s339
        $region44: #{tpu_custom_call.1} parent=31 // pred_fallthru
          _
        // Predicated region
        $region45: #{tpu_custom_call.1} parent=31 // pred_check
          %p341 = pneg %p205
        $region46: #{tpu_custom_call.1} parent=31 // pred_check_branch
          %343 = sbr.rel (%p341) target = $region48
        $region47: #{tpu_custom_call.1} parent=31 // pred_region
          %p344 = scmp.lt.s32.totalorder %s23, 1
          %s345 = scalar_select %p344, %s23, 1
          %s346 = smul.addr %s345, 8
          %s347 = scalar_lea.vmem %s7, %s346
        $region48: #{tpu_custom_call.1} parent=31 // pred_fallthru
          _
      $region32: #{tpu_custom_call.1} parent=5 // pred_fallthru
        _
      %p348 = scmp.le.s32.totalorder 1, %s23
      %p349 = scmp.lt.s32.totalorder %s23, 3
      %p350 = pnand %p348, %p349
      %p351 = pneg %p350
      // Predicated region
      $region49: #{tpu_custom_call.1} parent=5 // pred_check
        _
      $region50: #{tpu_custom_call.1} parent=5 // pred_check_branch
        %353 = sbr.rel (%p350) target = $region52
      $region51: #{tpu_custom_call.1} parent=5 // pred_region
        %s354 = ssub.s32 %s23, 1
        %p355 = scmp.lt.s32.totalorder %s28, 1
        %s356 = scalar_select %p355, %s28, 1
        %s357 = smul.addr %s356, 2
        %s358 = smul.addr %s357, 2
        %s359 = scalar_lea.vmem %s0, %s358
        %p360 = pneg %p49
        %p361 = pneg %p46
        %p362 = pneg %p70
        %p363 = pneg %p67
        %p364 = pneg %p91
        %p365 = pneg %p88
        %p366 = scmp.lt.s32.totalorder %s28, 1
        %s367 = scalar_select %p366, %s28, 1
        %s368 = smul.addr %s367, 8
        %s369 = scalar_lea.vmem %s3, %s368
        %p370 = pneg %p117
        %p371 = pneg %p114
        %p372 = pneg %p138
        %p373 = pneg %p135
        %p374 = pneg %p159
        %p375 = pneg %p156
        %p376 = scmp.lt.s32.totalorder %s28, 1
        %s377 = scalar_select %p376, %s28, 1
        %s378 = scalar_lea.vmem %s6, %s377
        %p379 = pneg %p185
        %p380 = pneg %p182
        %p381 = scmp.lt.s32.totalorder %s28, 1
        %s382 = scalar_select %p381, %s28, 1
        %s383 = smul.addr %s382, 8
        %s384 = scalar_lea.vmem %s7, %s383
        %p385 = pneg %p211
        %p386 = pneg %p208
        %p387 = pneg %p237
        %p388 = pneg %p234
        %p389 = scmp.lt.s32.totalorder %s28, 1
        %s390 = scalar_select %p389, %s28, 1
        %s391 = smul.addr %s390, 8
        %s392 = scalar_lea.vmem %s8, %s391
        %p393 = pneg %p263
        %p394 = pneg %p260
        %s395 = sand.u32 %s250, 1
        %s396 = scalar_lea.sflag [#allocation3], %s395
        %s397 = sand.u32 %s250, 1
        %s398 = smul.addr %s397, 4
        %s399 = scalar_lea.vmem [#allocation2], %s398
        %p400 = pneg %p289
        %p401 = pneg %p286
        %s402 = sand.u32 %s276, 1
        %s403 = scalar_lea.sflag [#allocation5], %s402
        %s404 = sand.u32 %s276, 1
        %s405 = smul.addr %s404, 8
        %s406 = scalar_lea.vmem [#allocation4], %s405
        %p407 = scmp.lt.s32.totalorder %s28, 1
        %s408 = scalar_select %p407, %s28, 1
        %s409 = smul.addr %s408, 2
        %s410 = smul.addr %s409, 2
        %s411 = scalar_lea.vmem %s0, %s410
        %p412 = scmp.lt.s32.totalorder %s28, 1
        %s413 = scalar_select %p412, %s28, 1
        %s414 = smul.addr %s413, 8
        %s415 = scalar_lea.vmem %s3, %s414
        %p416 = scmp.lt.s32.totalorder %s28, 1
        %s417 = scalar_select %p416, %s28, 1
        %s418 = scalar_lea.vmem %s6, %s417
        %p419 = scmp.lt.s32.totalorder %s28, 1
        %s420 = scalar_select %p419, %s28, 1
        %s421 = smul.addr %s420, 8
        %s422 = scalar_lea.vmem %s7, %s421
        %p423 = scmp.lt.s32.totalorder %s28, 1
        %s424 = scalar_select %p423, %s28, 1
        %s425 = smul.addr %s424, 8
        %s426 = scalar_lea.vmem %s8, %s425
        %v428 = vld [vmem:[%s411] sm:$0xf]
        %v429 = vld [vmem:[%s1] sm:$0xf]
        %v430 = vld [vmem:[%s1 + $0x4] sm:$0xf]
        %v431 = vld [vmem:[%s1 + $0x8] sm:$0xf]
        %v432 = vld [vmem:[%s1 + $0xc] sm:$0xf]
        %v433 = vld [vmem:[%s1 + $0x10] sm:$0xf]
        %v434 = vld [vmem:[%s1 + $0x14] sm:$0xf]
        %v435 = vld [vmem:[%s1 + $0x18] sm:$0xf]
        %v436 = vld [vmem:[%s1 + $0x1c] sm:$0xf]
        %v437 = vld [vmem:[%s1 + $0x20] sm:$0xf]
        %v438 = vld [vmem:[%s1 + $0x24] sm:$0xf]
        %v439 = vld [vmem:[%s1 + $0x28] sm:$0xf]
        %v440 = vld [vmem:[%s1 + $0x2c] sm:$0xf]
        %v441 = vld [vmem:[%s1 + $0x30] sm:$0xf]
        %v442 = vld [vmem:[%s1 + $0x34] sm:$0xf]
        %v443 = vld [vmem:[%s1 + $0x38] sm:$0xf]
        %v444 = vld [vmem:[%s1 + $0x3c] sm:$0xf]
        %v445 = vld [vmem:[%s1 + $0x40] sm:$0xf]
        %v446 = vld [vmem:[%s1 + $0x44] sm:$0xf]
        %v447 = vld [vmem:[%s1 + $0x48] sm:$0xf]
        %v448 = vld [vmem:[%s1 + $0x4c] sm:$0xf]
        %v449 = vld [vmem:[%s1 + $0x50] sm:$0xf]
        %v450 = vld [vmem:[%s1 + $0x54] sm:$0xf]
        %v451 = vld [vmem:[%s1 + $0x58] sm:$0xf]
        %v452 = vld [vmem:[%s1 + $0x5c] sm:$0xf]
        %v453 = vld [vmem:[%s1 + $0x60] sm:$0xf]
        %v454 = vld [vmem:[%s1 + $0x64] sm:$0xf]
        %v455 = vld [vmem:[%s1 + $0x68] sm:$0xf]
        %v456 = vld [vmem:[%s1 + $0x6c] sm:$0xf]
        %v457 = vld [vmem:[%s1 + $0x70] sm:$0xf]
        %v458 = vld [vmem:[%s1 + $0x74] sm:$0xf]
        %v459 = vld [vmem:[%s1 + $0x78] sm:$0xf]
        %v460 = vld [vmem:[%s1 + $0x7c] sm:$0xf]
        %v461 = vld [vmem:[%s2] sm:$0x1]
        %v463 = vlaneseq
        %v464 = vshrl.u32 %v463, 7
        %v465 = vsub.s32 0, %v464
        %v466 = vrot.slane %v461, %v465
        %v470 = vunpack.c.l.s4 1983009808
        %v471 = vunpack.c.0.s8 %v470
        %v472 = vlaneseq
        %v473 = vshrl.u32 %v472, 7
        %v474 = vsub.s32 %v471, %v473
        %v475 = vrot.slane %v428, %v474
        %v476 = vcombine.high %v475, %v475
        %v511 = vunpack.c.l.b16 %v429
        %v512 = vunpack.c.l.b16 %v430
        %v513 = vunpack.c.l.b16 %v431
        %v514 = vunpack.c.l.b16 %v432
        %v515 = vunpack.c.l.b16 %v433
        %v516 = vunpack.c.l.b16 %v434
        %v517 = vunpack.c.l.b16 %v435
        %v518 = vunpack.c.l.b16 %v436
        %v519 = vunpack.c.l.b16 %v437
        %v520 = vunpack.c.l.b16 %v438
        %v521 = vunpack.c.l.b16 %v439
        %v522 = vunpack.c.l.b16 %v440
        %v523 = vunpack.c.l.b16 %v441
        %v524 = vunpack.c.l.b16 %v442
        %v525 = vunpack.c.l.b16 %v443
        %v526 = vunpack.c.l.b16 %v444
        %v527 = vunpack.c.l.b16 %v445
        %v528 = vunpack.c.l.b16 %v446
        %v529 = vunpack.c.l.b16 %v447
        %v530 = vunpack.c.l.b16 %v448
        %v531 = vunpack.c.l.b16 %v449
        %v532 = vunpack.c.l.b16 %v450
        %v533 = vunpack.c.l.b16 %v451
        %v534 = vunpack.c.l.b16 %v452
        %v535 = vunpack.c.l.b16 %v453
        %v536 = vunpack.c.l.b16 %v454
        %v537 = vunpack.c.l.b16 %v455
        %v538 = vunpack.c.l.b16 %v456
        %v539 = vunpack.c.l.b16 %v457
        %v540 = vunpack.c.l.b16 %v458
        %v541 = vunpack.c.l.b16 %v459
        %v542 = vunpack.c.l.b16 %v460
        %v543 = vpack.c.b16 %v512, %v511
        %v544 = vpack.c.b16 %v514, %v513
        %v545 = vpack.c.b16 %v516, %v515
        %v546 = vpack.c.b16 %v518, %v517
        %v547 = vpack.c.b16 %v520, %v519
        %v548 = vpack.c.b16 %v522, %v521
        %v549 = vpack.c.b16 %v524, %v523
        %v550 = vpack.c.b16 %v526, %v525
        %v551 = vpack.c.b16 %v528, %v527
        %v552 = vpack.c.b16 %v530, %v529
        %v553 = vpack.c.b16 %v532, %v531
        %v554 = vpack.c.b16 %v534, %v533
        %v555 = vpack.c.b16 %v536, %v535
        %v556 = vpack.c.b16 %v538, %v537
        %v557 = vpack.c.b16 %v540, %v539
        %v558 = vpack.c.b16 %v542, %v541
        %575 = vmatprep.subr.bf16.mxu0 0
        %576 = vmatpush1.bf16.msra.mxu0 %v550
        %577 = vmatprep.subr.bf16.mxu0 0
        %578 = vmatpush1.bf16.msra.mxu0 %v549
        %579 = vmatprep.subr.bf16.mxu0 0
        %580 = vmatpush1.bf16.msra.mxu0 %v548
        %581 = vmatprep.subr.bf16.mxu0 0
        %582 = vmatpush1.bf16.msra.mxu0 %v547
        %583 = vmatprep.subr.bf16.mxu0 0
        %584 = vmatpush1.bf16.msra.mxu0 %v546
        %585 = vmatprep.subr.bf16.mxu0 0
        %586 = vmatpush1.bf16.msra.mxu0 %v545
        %587 = vmatprep.subr.bf16.mxu0 0
        %588 = vmatpush1.bf16.msra.mxu0 %v544
        %589 = vmatprep.subr.bf16.mxu0 0
        %590 = vmatpush1.bf16.msra.mxu0 %v543
        %591 = vmatprep.subr.bf16.mxu0 0
        %592 = vmatpush2.bf16.msra.mxu0 %v558
        %593 = vmatprep.subr.bf16.mxu0 0
        %594 = vmatpush2.bf16.msra.mxu0 %v557
        %595 = vmatprep.subr.bf16.mxu0 0
        %596 = vmatpush2.bf16.msra.mxu0 %v556
        %597 = vmatprep.subr.bf16.mxu0 0
        %598 = vmatpush2.bf16.msra.mxu0 %v555
        %599 = vmatprep.subr.bf16.mxu0 0
        %600 = vmatpush2.bf16.msra.mxu0 %v554
        %601 = vmatprep.subr.bf16.mxu0 0
        %602 = vmatpush2.bf16.msra.mxu0 %v553
        %603 = vmatprep.subr.bf16.mxu0 0
        %604 = vmatpush2.bf16.msra.mxu0 %v552
        %605 = vmatprep.subr.bf16.mxu0 0
        %606 = vmatpush2.bf16.msra.mxu0 %v551
        %607 = vmatprep.mubr.bf16.mxu0 %v476
        %608 = vmatmul.mubr.bf16.gmra.mxu0 %v475
        %v609 = vpop.f32.mrf.mxu0
        %v610 = vadd.f32 %v466, %v609
        %v611 = vpop.f32.mrf.mxu0
        %v612 = vpop.f32.mrf.mxu0
        %v613 = vpop.f32.mrf.mxu0
        %614 = vdwg.mxu0
        %v615 = vld [vmem:[%s415] sm:$0xff]
        %vm616 = vcmask 392192
        %v617 = vsel %vm616, %v615, 0.0
        %v618 = vrot.slane %v617, 4
        %v619 = vadd.f32 %v617, %v618
        %v620 = vrot.slane %v619, 2
        %v621 = vadd.f32 %v619, %v620
        %v622 = vrot.slane %v621, 1
        %v623 = vadd.f32 %v621, %v622
        %v624 = vrcp.pop 8.0
        %v625 = vmul.f32 %v623, %v624
        %v626 = vsub.f32 %v615, %v625
        %v627 = vmul.f32 %v626, %v626
        %v628 = vsel %vm616, %v627, 0.0
        %629 = vadd.xlane.f32.xlu0 %v628
        %v630 = vpop.xlane.xlu0 %629
        %v631 = vrot.slane %v630, 4
        %v632 = vmax.f32 %v630, %v631
        %v633 = vrot.slane %v632, 2
        %v634 = vmax.f32 %v632, %v633
        %v635 = vrot.slane %v634, 1
        %v636 = vmax.f32 %v634, %v635
        %v637 = vadd.f32 %v636, 1e-12
        %v638 = vrsqrt.pop %v637
        %v639 = vmul.f32 %v626, %v638
        %v640 = vld [vmem:[%s4] sm:$0xff]
        %v641 = vld [vmem:[%s4 + $0x8] sm:$0xff]
        %v642 = vld [vmem:[%s4 + $0x10] sm:$0xff]
        %v643 = vld [vmem:[%s4 + $0x18] sm:$0xff]
        %v644 = vld [vmem:[%s4 + $0x20] sm:$0xff]
        %v645 = vld [vmem:[%s4 + $0x28] sm:$0xff]
        %v646 = vld [vmem:[%s5] sm:$0x1]
        %v648 = vlaneseq
        %v649 = vshrl.u32 %v648, 7
        %v650 = vsub.s32 0, %v649
        %v651 = vrot.slane %v646, %v650
        %v654 = vsel %vm616, %v639, 0
        %656 = vmatprep.subr.mxu0 0.0
        %657 = vmatpush1.msra.mxu0 0.0
        %658 = vmatprep.subr.mxu0 0.0
        %659 = vmatpush1.msra.mxu0 0.0
        %660 = vmatprep.subr.mxu0 0.0
        %661 = vmatpush1.msra.mxu0 0.0
        %662 = vmatprep.subr.mxu0 0.0
        %663 = vmatpush1.msra.mxu0 0.0
        %664 = vmatprep.subr.mxu0 0.0
        %665 = vmatpush1.msra.mxu0 0.0
        %666 = vmatprep.subr.mxu0 0.0
        %667 = vmatpush1.msra.mxu0 0.0
        %668 = vmatprep.subr.mxu0 0.0
        %669 = vmatpush1.msra.mxu0 0.0
        %670 = vmatprep.subr.mxu0 0.0
        %671 = vmatpush1.msra.mxu0 0.0
        %672 = vmatprep.subr.mxu0 0.0
        %673 = vmatpush1.msra.mxu0 0.0
        %674 = vmatprep.subr.mxu0 0.0
        %675 = vmatpush1.msra.mxu0 0.0
        %676 = vmatprep.subr.mxu0 0.0
        %677 = vmatpush1.msra.mxu0 %v645
        %678 = vmatprep.subr.mxu0 0.0
        %679 = vmatpush1.msra.mxu0 %v644
        %680 = vmatprep.subr.mxu0 0.0
        %681 = vmatpush1.msra.mxu0 %v643
        %682 = vmatprep.subr.mxu0 0.0
        %683 = vmatpush1.msra.mxu0 %v642
        %684 = vmatprep.subr.mxu0 0.0
        %685 = vmatpush1.msra.mxu0 %v641
        %686 = vmatprep.subr.mxu0 0.0
        %687 = vmatpush1.msra.mxu0 %v640
        %688 = vmatprep.subr.mxu0 0.0
        %689 = vmatpush2.msra.mxu0 0.0
        %690 = vmatprep.subr.mxu0 0.0
        %691 = vmatpush2.msra.mxu0 0.0
        %692 = vmatprep.subr.mxu0 0.0
        %693 = vmatpush2.msra.mxu0 0.0
        %694 = vmatprep.subr.mxu0 0.0
        %695 = vmatpush2.msra.mxu0 0.0
        %696 = vmatprep.subr.mxu0 0.0
        %697 = vmatpush2.msra.mxu0 0.0
        %698 = vmatprep.subr.mxu0 0.0
        %699 = vmatpush2.msra.mxu0 0.0
        %700 = vmatprep.subr.mxu0 0.0
        %701 = vmatpush2.msra.mxu0 0.0
        %702 = vmatprep.subr.mxu0 0.0
        %703 = vmatpush2.msra.mxu0 0.0
        %704 = vmatprep.subr.mxu0 0.0
        %705 = vmatpush2.msra.mxu0 0.0
        %706 = vmatprep.subr.mxu0 0.0
        %707 = vmatpush2.msra.mxu0 0.0
        %708 = vmatprep.subr.mxu0 0.0
        %709 = vmatpush2.msra.mxu0 0.0
        %710 = vmatprep.subr.mxu0 0.0
        %711 = vmatpush2.msra.mxu0 0.0
        %712 = vmatprep.subr.mxu0 0.0
        %713 = vmatpush2.msra.mxu0 0.0
        %714 = vmatprep.subr.mxu0 0.0
        %715 = vmatpush2.msra.mxu0 0.0
        %716 = vmatprep.subr.mxu0 0.0
        %717 = vmatpush2.msra.mxu0 0.0
        %718 = vmatprep.subr.mxu0 0.0
        %719 = vmatpush2.msra.mxu0 0.0
        %720 = vmatprep.mubr.f32.mxu0 0.0
        %721 = vmatmul.mubr.f32.gmra.mxu0 %v654
        %v722 = vpop.f32.mrf.mxu0
        %v723 = vadd.f32 %v651, %v722
        %v724 = vpop.f32.mrf.mxu0
        %725 = vdwg.mxu0
        %v726 = vmul.f32 %v610, %v610
        %vm727 = vcmask 257024
        %v728 = vsel %vm727, %v726, 0.0
        %729 = vadd.xlane.f32.xlu0 %v728
        %v730 = vpop.xlane.xlu0 %729
        %v731 = vrsqrt.pop %v730
        %v732 = vmul.f32 %v730, %v731
        %vm733 = vcmp.eq.f32.partialorder %v730, inf
        %v734 = vsel %vm733, %v730, %v732
        %vm735 = vcmp.eq.f32.partialorder %v730, 0.0
        %v736 = vand.u32 %v730, 2147483648
        %v737 = vsel %vm735, %v736, %v734
        %v738 = vadd.f32 %v737, 1e-06
        %v739 = vrcp.pop %v738
        %v740 = vmul.f32 %v723, %v723
        %vm741 = vcmask 261120
        %v742 = vsel %vm741, %v740, 0.0
        %743 = vadd.xlane.f32.xlu0 %v742
        %v744 = vpop.xlane.xlu0 %743
        %v745 = vrsqrt.pop %v744
        %v746 = vmul.f32 %v744, %v745
        %vm747 = vcmp.eq.f32.partialorder %v744, inf
        %v748 = vsel %vm747, %v744, %v746
        %vm749 = vcmp.eq.f32.partialorder %v744, 0.0
        %v750 = vand.u32 %v744, 2147483648
        %v751 = vsel %vm749, %v750, %v748
        %v752 = vadd.f32 %v751, 1e-06
        %v753 = vrcp.pop %v752
        %v754 = vmul.f32 %v610, %v739
        %v755 = vmul.f32 %v723, %v753
        %756 = vst.msk [vmem:[%s399] sm:$0xf] %vm727, %v754
        %757 = vst.msk [vmem:[%s406] sm:$0xff] %vm741, %v755
        %v759 = vsel %vm741, %v755, 0
        %v762 = vsel %vm741, %v754, 0
        %764 = vmatprep.subr.mxu0 0.0
        %765 = vmatpush1.xpose.msra.mxu0 0.0
        %766 = vmatprep.subr.mxu0 0.0
        %767 = vmatpush1.xpose.msra.mxu0 0.0
        %768 = vmatprep.subr.mxu0 0.0
        %769 = vmatpush1.xpose.msra.mxu0 0.0
        %770 = vmatprep.subr.mxu0 0.0
        %771 = vmatpush1.xpose.msra.mxu0 0.0
        %772 = vmatprep.subr.mxu0 0.0
        %773 = vmatpush1.xpose.msra.mxu0 0.0
        %774 = vmatprep.subr.mxu0 0.0
        %775 = vmatpush1.xpose.msra.mxu0 0.0
        %776 = vmatprep.subr.mxu0 0.0
        %777 = vmatpush1.xpose.msra.mxu0 0.0
        %778 = vmatprep.subr.mxu0 0.0
        %779 = vmatpush1.xpose.msra.mxu0 0.0
        %780 = vmatprep.subr.mxu0 0.0
        %781 = vmatpush1.xpose.msra.mxu0 0.0
        %782 = vmatprep.subr.mxu0 0.0
        %783 = vmatpush1.xpose.msra.mxu0 0.0
        %784 = vmatprep.subr.mxu0 0.0
        %785 = vmatpush1.xpose.msra.mxu0 0.0
        %786 = vmatprep.subr.mxu0 0.0
        %787 = vmatpush1.xpose.msra.mxu0 0.0
        %788 = vmatprep.subr.mxu0 0.0
        %789 = vmatpush1.xpose.msra.mxu0 0.0
        %790 = vmatprep.subr.mxu0 0.0
        %791 = vmatpush1.xpose.msra.mxu0 0.0
        %792 = vmatprep.subr.mxu0 0.0
        %793 = vmatpush1.xpose.msra.mxu0 0.0
        %794 = vmatprep.subr.mxu0 0.0
        %795 = vmatpush1.xpose.msra.mxu0 %v762
        %796 = vmatprep.subr.mxu0 0.0
        %797 = vmatpush2.xpose.msra.mxu0 0.0
        %798 = vmatprep.subr.mxu0 0.0
        %799 = vmatpush2.xpose.msra.mxu0 0.0
        %800 = vmatprep.subr.mxu0 0.0
        %801 = vmatpush2.xpose.msra.mxu0 0.0
        %802 = vmatprep.subr.mxu0 0.0
        %803 = vmatpush2.xpose.msra.mxu0 0.0
        %804 = vmatprep.subr.mxu0 0.0
        %805 = vmatpush2.xpose.msra.mxu0 0.0
        %806 = vmatprep.subr.mxu0 0.0
        %807 = vmatpush2.xpose.msra.mxu0 0.0
        %808 = vmatprep.subr.mxu0 0.0
        %809 = vmatpush2.xpose.msra.mxu0 0.0
        %810 = vmatprep.subr.mxu0 0.0
        %811 = vmatpush2.xpose.msra.mxu0 0.0
        %812 = vmatprep.subr.mxu0 0.0
        %813 = vmatpush2.xpose.msra.mxu0 0.0
        %814 = vmatprep.subr.mxu0 0.0
        %815 = vmatpush2.xpose.msra.mxu0 0.0
        %816 = vmatprep.subr.mxu0 0.0
        %817 = vmatpush2.xpose.msra.mxu0 0.0
        %818 = vmatprep.subr.mxu0 0.0
        %819 = vmatpush2.xpose.msra.mxu0 0.0
        %820 = vmatprep.subr.mxu0 0.0
        %821 = vmatpush2.xpose.msra.mxu0 0.0
        %822 = vmatprep.subr.mxu0 0.0
        %823 = vmatpush2.xpose.msra.mxu0 0.0
        %824 = vmatprep.subr.mxu0 0.0
        %825 = vmatpush2.xpose.msra.mxu0 0.0
        %826 = vmatprep.subr.mxu0 0.0
        %827 = vmatpush2.xpose.msra.mxu0 0.0
        %828 = vmatprep.mubr.f32.mxu0 0.0
        %829 = vmatmul.mubr.f32.gmra.mxu0 %v759
        %v830 = vpop.f32.mrf.mxu0
        %v831 = vadd.f32 0.0, %v830
        %v832 = vpop.f32.mrf.mxu0
        %833 = vdwg.mxu0
        %v834 = vmul.f32 %v831, 10.0
        %v835 = vld [vmem:[%s422] sm:$0xff]
        %v836 = vld [vmem:[%s418] sm:$0x1]
        %838 = vset.pattern.permute.xlu0 0
        %839 = vperm.xlu0 %838, %v835
        %v840 = vpop.permute.xlu0 %839
        %v843 = vlaneseq
        %v844 = vshrl.u32 %v843, 7
        %v845 = vsub.s32 0, %v844
        %v846 = vrot.slane %v836, %v845
        %v848 = vmul.f32 %v840, %v846
        %vm849 = vcmp.gt.f32.partialorder %v848, 0.0
        %v850 = vsel %vm849, %v834, -1e+09
        %vm851 = vcmask 31744
        %v852 = vsel %vm851, %v850, -inf
        %853 = vmax.xlane.f32.xlu0 %v852
        %v854 = vpop.xlane.xlu0 %853
        %v855 = vrot.slane %v854, 4
        %v856 = vmax.f32 %v854, %v855
        %v857 = vrot.slane %v856, 2
        %v858 = vmax.f32 %v856, %v857
        %v859 = vrot.slane %v858, 1
        %v860 = vmax.f32 %v858, %v859
        %v861 = vsub.f32 %v850, %v860
        %v862 = vmul.f32 %v861, 1.442695
        %v863 = vpow.pop %v862
        %v864 = vsel %vm851, %v863, 0.0
        %865 = vadd.xlane.f32.xlu0 %v864
        %v866 = vpop.xlane.xlu0 %865
        %v867 = vadd.f32 %v866, 1e-30
        %v868 = vrcp.pop %v867
        %v869 = vrot.slane %v864, 4
        %v870 = vadd.f32 %v864, %v869
        %v871 = vrot.slane %v870, 2
        %v872 = vadd.f32 %v870, %v871
        %v873 = vrot.slane %v872, 1
        %v874 = vadd.f32 %v872, %v873
        %v875 = vadd.f32 %v874, 1e-30
        %v876 = vrcp.pop %v875
        %v877 = vmul.f32 %v863, %v868
        %v878 = vmul.f32 %v863, %v876
        %v879 = vmul.f32 %v877, %v878
        %880 = vst.msk [vmem:[%s426] sm:$0xff] %vm851, %v879
        %p881 = scmp.lt.s32.totalorder %s28, 1
        %s882 = scalar_select %p881, %s28, 1
        %s883 = smul.addr %s882, 8
        %s884 = scalar_lea.vmem %s8, %s883
        %s885 = sand.u32 %s250, 1
        %s886 = scalar_lea.sflag [#allocation3], %s885
        %s887 = sand.u32 %s250, 1
        %s888 = smul.addr %s887, 4
        %s889 = scalar_lea.vmem [#allocation2], %s888
        %s890 = sand.u32 %s276, 1
        %s891 = scalar_lea.sflag [#allocation5], %s890
        %s892 = sand.u32 %s276, 1
        %s893 = smul.addr %s892, 8
        %s894 = scalar_lea.vmem [#allocation4], %s893
        // Predicated region
        $region53: #{tpu_custom_call.1} parent=51 // pred_check
          %p895 = pneg %p234
        $region54: #{tpu_custom_call.1} parent=51 // pred_check_branch
          %897 = sbr.rel (%p895) target = $region56
        $region55: #{tpu_custom_call.1} parent=51 // pred_region
          _
        $region56: #{tpu_custom_call.1} parent=51 // pred_fallthru
          _
        // Predicated region
        $region57: #{tpu_custom_call.1} parent=51 // pred_check
          %p898 = pneg %p260
        $region58: #{tpu_custom_call.1} parent=51 // pred_check_branch
          %900 = sbr.rel (%p898) target = $region60
        $region59: #{tpu_custom_call.1} parent=51 // pred_region
          %s902 = ssub.s32 64, 64
          %903 = vsyncadd %s886, %s902
          %s904 = smul.addr %s28, 64
          %s905 = scalar_lea.hbm %s9, %s904
          %s907 = sshll.u32 %s889, 4
          %s908 = int_to_ptr.vmem [resolvable:$true] %s907
          %910 = dma.vmem_to_hbm [thread:$0]  %s908, 64, %s905, %s886
        $region60: #{tpu_custom_call.1} parent=51 // pred_fallthru
          _
        // Predicated region
        $region61: #{tpu_custom_call.1} parent=51 // pred_check
          %p911 = pneg %p286
        $region62: #{tpu_custom_call.1} parent=51 // pred_check_branch
          %913 = sbr.rel (%p911) target = $region64
        $region63: #{tpu_custom_call.1} parent=51 // pred_region
          %s915 = ssub.s32 128, 128
          %916 = vsyncadd %s891, %s915
          %s917 = smul.addr %s28, 128
          %s918 = scalar_lea.hbm %s10, %s917
          %s920 = sshll.u32 %s894, 4
          %s921 = int_to_ptr.vmem [resolvable:$true] %s920
          %923 = dma.vmem_to_hbm [thread:$0]  %s921, 128, %s918, %s891
        $region64: #{tpu_custom_call.1} parent=51 // pred_fallthru
          _
      $region52: #{tpu_custom_call.1} parent=5 // pred_fallthru
        _
      %p924 = scmp.le.s32.totalorder 2, %s23
      // Predicated region
      $region65: #{tpu_custom_call.1} parent=5 // pred_check
        %p925 = pneg %p924
      $region66: #{tpu_custom_call.1} parent=5 // pred_check_branch
        %927 = sbr.rel (%p925) target = $region68
      $region67: #{tpu_custom_call.1} parent=5 // pred_region
        %s928 = ssub.s32 %s23, 2
        // Predicated region
        $region69: #{tpu_custom_call.1} parent=67 // pred_check
          %p929 = pneg %p240
        $region70: #{tpu_custom_call.1} parent=67 // pred_check_branch
          %931 = sbr.rel (%p929) target = $region72
        $region71: #{tpu_custom_call.1} parent=67 // pred_region
          %p932 = scmp.lt.s32.totalorder %s29, 1
          %s933 = scalar_select %p932, %s29, 1
          %s934 = smul.addr %s933, 8
          %s935 = scalar_lea.vmem %s8, %s934
        $region72: #{tpu_custom_call.1} parent=67 // pred_fallthru
          _
        // Predicated region
        $region73: #{tpu_custom_call.1} parent=67 // pred_check
          %p936 = pneg %p266
        $region74: #{tpu_custom_call.1} parent=67 // pred_check_branch
          %938 = sbr.rel (%p936) target = $region76
        $region75: #{tpu_custom_call.1} parent=67 // pred_region
          %s939 = sand.u32 %s251, 1
          %s940 = scalar_lea.sflag [#allocation3], %s939
          %s941 = sand.u32 %s251, 1
          %s942 = smul.addr %s941, 4
          %s943 = scalar_lea.vmem [#allocation2], %s942
          %944 = dma.done %s940, 64
        $region76: #{tpu_custom_call.1} parent=67 // pred_fallthru
          _
        // Predicated region
        $region77: #{tpu_custom_call.1} parent=67 // pred_check
          %p945 = pneg %p292
        $region78: #{tpu_custom_call.1} parent=67 // pred_check_branch
          %947 = sbr.rel (%p945) target = $region80
        $region79: #{tpu_custom_call.1} parent=67 // pred_region
          %s948 = sand.u32 %s277, 1
          %s949 = scalar_lea.sflag [#allocation5], %s948
          %s950 = sand.u32 %s277, 1
          %s951 = smul.addr %s950, 8
          %s952 = scalar_lea.vmem [#allocation4], %s951
          %953 = dma.done %s949, 128
        $region80: #{tpu_custom_call.1} parent=67 // pred_fallthru
          _
      $region68: #{tpu_custom_call.1} parent=5 // pred_fallthru
        _
    $region6: #{tpu_custom_call.1} parent=1 // loop_footer
      %s27 = sadd.s32 1, %s23
    $region7: #{tpu_custom_call.1} parent=1 // loop_footer_branch
      %22 = sbr.rel target = $region3
    $region8: #{tpu_custom_call.1} parent=1 // loop_exit
      _
    %954 = vsyncpa [#allocation3], 1
    %s955 = scalar_lea.sflag [#allocation3], 1
    %956 = vsyncpa %s955, 1
    %957 = vsyncpa [#allocation5], 1
    %s958 = scalar_lea.sflag [#allocation5], 1
    %959 = vsyncpa %s958, 1

</llo_original>
